<compile_context>
chip_gen: v7x
topology: tpu7x:2x2x1
jax: 0.10.0
libtpu: 0.0.40
codegen_flags: <defaults>
</compile_context>

<pallas_src>
import jax
import jax.numpy as jnp
from jax.experimental import pallas as pl
from jax.experimental.pallas import tpu as pltpu


def _trace_line_kernel(x_ref, w_ref, b_ref, o_ref):
    # x_ref: (1, R_blk, T_blk) tile of x viewed as (B, R, T)
    # w_ref: (1, R_blk)        weight row (matches the output lane axis)
    # b_ref: (1, 1)            scalar bias held in SMEM (f32)
    # o_ref: (1, T_blk, R_blk) tile of h viewed as (B, T, R)
    xt = x_ref[0].T                               # (T_blk, R_blk): in-kernel XLU transpose
    o_ref[0] = (xt * w_ref[...] + b_ref[0, 0]).astype(o_ref.dtype)


def trace_line_2d(x, weight, bias, *, target_block_bytes=4 * 1024 * 1024):
    """Pallas equivalent of TraceLine2d.forward.

    x: (N, F, R, T); weight: (R, 1); bias: (1, 1)
    returns h of shape (N, F, T, R) with
      h[n, f, t, r] = x[n, f, r, t] * weight[r, 0] + bias[0, 0]
    """
    N, F, R, T = x.shape
    dtype = x.dtype
    itemsize = jnp.dtype(dtype).itemsize
    B = N * F

    xb = x.reshape(B, R, T)                        # leading-dim merge: metadata only
    w_row = weight.reshape(1, R).astype(dtype)     # weight.t() as a lane-aligned row
    b_smem = bias.reshape(1, 1).astype(jnp.float32)

    # ---- Tile sizing -------------------------------------------------------
    elems_budget = max(8 * 128, target_block_bytes // itemsize)

    # R: lane axis of the output / sublane axis of the input.  Keep it whole
    # when it fits next to at least a 128-wide strip of T; otherwise tile it
    # in multiples of 128 (required for a non-full output lane axis).
    t_floor = min(T, 128)
    if R * t_floor <= elems_budget:
        r_blk = R
    else:
        r_blk = max(128, ((elems_budget // t_floor) // 128) * 128)

    # T: lane axis of the input.  Whole if it fits, else a multiple of 128.
    rem = max(1, elems_budget // r_blk)
    t_blk = T if T <= rem else max(128, (rem // 128) * 128)

    nr = pl.cdiv(R, r_blk)
    nt = pl.cdiv(T, t_blk)

    # Pipeline depth / v7x megacore balance: prefer an even, >=2-step grid.
    # Halving T_blk keeps the 128-multiple rule whenever T_blk % 256 == 0.
    if (B * nr * nt) % 2 == 1 and t_blk % 256 == 0:
        t_blk //= 2
        nt = pl.cdiv(T, t_blk)

    grid = (B, nr, nt)

    # Explicit VMEM budget: double-buffered input + output tiles plus slack
    # (v5e's default scoped limit is only 16 MiB; v7x physical VMEM is 64 MiB).
    block_bytes = r_blk * t_blk * itemsize
    vmem_limit = max(32 << 20, min(4 * block_bytes + (4 << 20), 112 << 20))

    out_flat = pl.pallas_call(
        _trace_line_kernel,
        out_shape=jax.ShapeDtypeStruct((B, T, R), dtype),
        grid_spec=pltpu.PrefetchScalarGridSpec(
            num_scalar_prefetch=0,
            grid=grid,
            in_specs=[
                pl.BlockSpec((1, r_blk, t_blk), lambda bi, ri, ti: (bi, ri, ti)),
                pl.BlockSpec((1, r_blk), lambda bi, ri, ti: (0, ri)),
                pl.BlockSpec(memory_space=pltpu.MemorySpace.SMEM),
            ],
            out_specs=pl.BlockSpec((1, t_blk, r_blk), lambda bi, ri, ti: (bi, ti, ri)),
        ),
        compiler_params=pltpu.CompilerParams(
            dimension_semantics=("parallel", "parallel", "parallel"),
            vmem_limit_bytes=vmem_limit,
        ),
    )(xb, w_row, b_smem)

    return out_flat.reshape(N, F, T, R)            # leading-dim split: metadata only


if __name__ == "__main__":
    key = jax.random.PRNGKey(0)
    k_x, k_w, k_b = jax.random.split(key, 3)

    def reference(x, weight, bias):
        # Pure-JAX TraceLine.forward.
        return jnp.transpose(x, (0, 1, 3, 2)) * weight.reshape(1, 1, 1, -1) + bias[0, 0]

    # Shapes consistent with the module: N=2, F=4, R=16, T=16.
    N, F, R, T = 2, 4, 16, 16
    x = jax.random.normal(k_x, (N, F, R, T), dtype=jnp.float32)
    weight = jax.random.normal(k_w, (R, 1), dtype=jnp.float32)   # nn.Parameter(randn(R, 1))
    bias = jax.random.normal(k_b, (1, 1), dtype=jnp.float32)     # nn.Parameter(randn(1, 1))

    y = jax.block_until_ready(trace_line_2d(x, weight, bias))
    assert y.shape == (N, F, T, R)
    assert jnp.allclose(y, reference(x, weight, bias), atol=1e-6, rtol=1e-6)

    # Second check: a small target_block_bytes forces a multi-step T grid with
    # a ragged, masked tail (T=320 split 128/128/64) — exercises the cdiv-grid
    # masking path flagged in the review.
    N2, F2, R2, T2 = 1, 2, 8, 320
    x2 = jax.random.normal(k_x, (N2, F2, R2, T2), dtype=jnp.float32)
    w2 = jax.random.normal(k_w, (R2, 1), dtype=jnp.float32)
    b2 = jax.random.normal(k_b, (1, 1), dtype=jnp.float32)
    y2 = jax.block_until_ready(
        trace_line_2d(x2, w2, b2, target_block_bytes=R2 * 128 * 4))
    assert y2.shape == (N2, F2, T2, R2)
    assert jnp.allclose(y2, reference(x2, w2, b2), atol=1e-6, rtol=1e-6)

    print("KERNEL_OK")
</pallas_src>

<mosaic_0001>
module attributes {stable_mosaic.version = 11 : i64} {
  func.func @_trace_line_kernel(%arg0: i32, %arg1: i32, %arg2: i32, %arg3: memref<1x16x16xf32, #tpu.memory_space<vmem>>, %arg4: memref<1x16xf32, #tpu.memory_space<vmem>>, %arg5: memref<1x1xf32, #tpu.memory_space<smem>>, %arg6: memref<1x16x16xf32, #tpu.memory_space<vmem>>) attributes {dimension_semantics = [#tpu.dimension_semantics<parallel>, #tpu.dimension_semantics<parallel>, #tpu.dimension_semantics<parallel>], iteration_bounds = array<i64: 8, 1, 1>, scalar_prefetch = 0 : i64, scratch_operands = 0 : i64, tpu.core_type = #tpu.core_type<tc>, window_params = [{transform_indices = @transform_0, window_bounds = array<i64: 1, 16, 16>}, {transform_indices = @transform_1, window_bounds = array<i64: 1, 16>}, {transform_indices = @transform_2, window_bounds = array<i64: 1, 1>}, {transform_indices = @transform_3, window_bounds = array<i64: 1, 16, 16>}]} {
    %c0 = arith.constant 0 : index
    %c0_0 = arith.constant 0 : index
    %c0_1 = arith.constant 0 : index
    %0 = vector.load %arg3[%c0, %c0_0, %c0_1] : memref<1x16x16xf32, #tpu.memory_space<vmem>>, vector<1x16x16xf32>
    %1 = vector.shape_cast %0 : vector<1x16x16xf32> to vector<16x16xf32>
    %2 = tpu.transpose %1, [1, 0] : vector<16x16xf32> -> vector<16x16xf32>
    %c0_2 = arith.constant 0 : index
    %c0_3 = arith.constant 0 : index
    %3 = vector.load %arg4[%c0_2, %c0_3] : memref<1x16xf32, #tpu.memory_space<vmem>>, vector<1x16xf32>
    %4 = vector.broadcast %3 : vector<1x16xf32> to vector<16x16xf32>
    %5 = arith.mulf %2, %4 : vector<16x16xf32>
    %c0_4 = arith.constant 0 : index
    %c0_5 = arith.constant 0 : index
    %6 = memref.load %arg5[%c0_4, %c0_5] : memref<1x1xf32, #tpu.memory_space<smem>>
    %7 = vector.broadcast %6 : f32 to vector<16x16xf32>
    %8 = arith.addf %5, %7 : vector<16x16xf32>
    %c0_6 = arith.constant 0 : index
    %c0_7 = arith.constant 0 : index
    %c0_8 = arith.constant 0 : index
    %9 = vector.load %arg6[%c0_6, %c0_7, %c0_8] : memref<1x16x16xf32, #tpu.memory_space<vmem>>, vector<1x16x16xf32>
    %10 = vector.shape_cast %9 : vector<1x16x16xf32> to vector<16x16xf32>
    %11 = vector.shape_cast %8 : vector<16x16xf32> to vector<1x16x16xf32>
    tpu.vector_store %arg6[%c0_6, %c0_7, %c0_8], %11 {strides = array<i32>} : memref<1x16x16xf32, #tpu.memory_space<vmem>>, vector<1x16x16xf32>,
    return
  }
  func.func @transform_0(%arg0: i32, %arg1: i32, %arg2: i32) -> (i32, i32, i32) {
    %c0_i32 = arith.constant 0 : i32
    return %arg0, %arg1, %arg2 : i32, i32, i32
  }
  func.func @transform_1(%arg0: i32, %arg1: i32, %arg2: i32) -> (i32, i32) {
    %c0_i32 = arith.constant 0 : i32
    %c0_i32_0 = arith.constant 0 : i32
    return %c0_i32, %arg1 : i32, i32
  }
  func.func @transform_2(%arg0: i32, %arg1: i32, %arg2: i32) -> (i32, i32) {
    %c0_i32 = arith.constant 0 : i32
    %c0_i32_0 = arith.constant 0 : i32
    %c0_i32_1 = arith.constant 0 : i32
    return %c0_i32, %c0_i32_0 : i32, i32
  }
  func.func @transform_3(%arg0: i32, %arg1: i32, %arg2: i32) -> (i32, i32, i32) {
    %c0_i32 = arith.constant 0 : i32
    return %arg0, %arg2, %arg1 : i32, i32, i32
  }
}

</mosaic_0001>

<llo_original>
// kernel: tpu_custom_call.1
$region0: #{tpu_custom_call.1}
  #allocation0 [shape = 'u32[]', space=smem, size = 0x4, offset = 0x4, fixed_abs, tag = 'smem constant byte address 0x4 - core index']
  #allocation1 [shape = 'u32[144,128]{1,0:T(1,128)}', space=vmem, size = 0x12000, scoped, tag = 'internal scratch']
  #allocation2 [shape = 'f32[1,1]{1,0:T(1,128)S(6)}', space=smem, size = 0x200, scoped, tag = 'scoped memory for tpu_custom_call.1']
  %s0 = inlined_call_operand.hbm [shape: f32[8,16,16], index: 0, kind: input, shape index: {}]
  %s1 = inlined_call_operand.vmem [shape: f32[1,16], index: 1, kind: input, shape index: {}]
  %s2 = inlined_call_operand.<no memory space> [shape: f32[1,1], index: 2, kind: input, shape index: {}]
  %s3 = inlined_call_operand.hbm [shape: f32[8,16,16], index: 3, kind: output, shape index: {}]
  %s4 = sld [smem:[#allocation0]]
  $region49: #{tpu_custom_call.1} parent=0
    _
  %s6 = ssub.s32 1, %s4
  %s7 = scalar_select 0, %s6, %s4
  %8 = sst [smem:[#allocation2]] %s2
  $region1: #{tpu_custom_call.1} parent=0
    #allocation3 [shape = 'u8[16384]{0}', space=vmem, size = 0x4000, scoped, tag = 'input window, operand 0']
    #allocation4 [shape = 's32[2]{0}', space=sflag, size = 0x8, scoped, tag = 'scoped memory for tpu_custom_call.1']
    #allocation5 [shape = 's32[2]{0}', space=sflag, size = 0x8, scoped, tag = 'scoped memory for tpu_custom_call.1']
    #allocation6 [shape = 'u8[16384]{0}', space=vmem, size = 0x4000, scoped, tag = 'output window, operand 0']
    %9 = vsyncpa [#allocation4], 0
    %s10 = scalar_lea.sflag [#allocation4], 1
    %11 = vsyncpa %s10, 0
    %12 = vsyncpa [#allocation5], 0
    %s13 = scalar_lea.sflag [#allocation5], 1
    %14 = vsyncpa %s13, 0
    loop: start=0, step=1, limit=10
    $region2: #{tpu_custom_call.1} parent=1 // loop_pre_header
      _
    $region3: #{tpu_custom_call.1} parent=1 // loop_header
      %s16 = sphi 0, %s20
      %p17 = scmp.ge.s32.totalorder %s16, 10
      %s23 = sphi 0, %s42
      %s24 = sphi 0, %s38
      %s25 = sphi 0, %s34
      %s26 = sphi 0, %s23
      %s27 = sphi 0, %s24
      %s28 = sphi 0, %s25
      %s29 = sphi 0, %s26
      %s30 = sphi 0, %s27
      %s31 = sphi 0, %s28
      %s49 = sphi 0, %s51
      %s52 = sphi 0, %s49
      %s53 = sphi 0, %s52
      %s69 = sphi 0, %s53
      %s75 = sphi 0, %s77
      %s78 = sphi 0, %s75
      %s79 = sphi 0, %s78
      %s95 = sphi 0, %s79
      %s99 = sphi 0, %s99
      %s101 = sphi 0, %s99
      %s102 = sphi 0, %s101
      %s116 = sphi 0, %s102
      %s126 = sphi 0, %s128
      %s129 = sphi 0, %s126
      %s130 = sphi 0, %s129
      %s146 = sphi 0, %s130
    $region4: #{tpu_custom_call.1} parent=1 // loop_header_branch
      %19 = sbr.rel (%p17) target = $region8
    $region5: #{tpu_custom_call.1} parent=1 // loop_body
      %s21 = ssub.s32 %s16, 1
      %s22 = ssub.s32 %s16, 2
      %s32 = sadd.s32 1, %s25
      %p33 = scmp.ge.s32.totalorder %s32, 1
      %s34 = scalar_select %p33, 0, %s32
      %s35 = sadd.s32 1, %s24
      %s36 = scalar_select %p33, %s35, %s24
      %p37 = scmp.ge.s32.totalorder %s36, 1
      %s38 = scalar_select %p37, 0, %s36
      %s39 = sadd.s32 1, %s23
      %s40 = scalar_select %p37, %s39, %s23
      %p41 = scmp.ge.s32.totalorder %s40, 8
      %s42 = scalar_select %p41, 0, %s40
      %s43 = ssub.s32 %s23, %s42
      %s44 = ssub.s32 %s24, %s38
      %s45 = sor.u32 %s43, %s44
      %s46 = ssub.s32 %s25, %s34
      %s47 = sor.u32 %s45, %s46
      %p48 = scmp.eq.s32.totalorder %s47, 0
      %s50 = sadd.s32 %s49, 1
      %s51 = scalar_select %p48, %s49, %s50
      %p54 = pneg %p48
      %p55 = scmp.eq.s32.totalorder %s16, 7
      %p56 = por %p54, %p55
      %p57 = scmp.ne.s32.totalorder %s49, %s52
      %p58 = scmp.eq.s32.totalorder %s16, 0
      %p59 = por %p57, %p58
      %p60 = scmp.ne.s32.totalorder %s49, %s52
      %p61 = scmp.eq.s32.totalorder %s21, 7
      %p62 = por %p60, %p61
      %p63 = scmp.ne.s32.totalorder %s52, %s53
      %p64 = scmp.eq.s32.totalorder %s21, 0
      %p65 = por %p63, %p64
      %p66 = scmp.ne.s32.totalorder %s52, %s53
      %p67 = scmp.eq.s32.totalorder %s22, 7
      %p68 = por %p66, %p67
      %p70 = scmp.ne.s32.totalorder %s53, %s69
      %p71 = scmp.eq.s32.totalorder %s22, 0
      %p72 = por %p70, %p71
      %s73 = ssub.s32 %s24, %s38
      %p74 = scmp.eq.s32.totalorder %s73, 0
      %s76 = sadd.s32 %s75, 1
      %s77 = scalar_select %p74, %s75, %s76
      %p80 = pneg %p74
      %p81 = scmp.eq.s32.totalorder %s16, 7
      %p82 = por %p80, %p81
      %p83 = scmp.ne.s32.totalorder %s75, %s78
      %p84 = scmp.eq.s32.totalorder %s16, 0
      %p85 = por %p83, %p84
      %p86 = scmp.ne.s32.totalorder %s75, %s78
      %p87 = scmp.eq.s32.totalorder %s21, 7
      %p88 = por %p86, %p87
      %p89 = scmp.ne.s32.totalorder %s78, %s79
      %p90 = scmp.eq.s32.totalorder %s21, 0
      %p91 = por %p89, %p90
      %p92 = scmp.ne.s32.totalorder %s78, %s79
      %p93 = scmp.eq.s32.totalorder %s22, 7
      %p94 = por %p92, %p93
      %p96 = scmp.ne.s32.totalorder %s79, %s95
      %p97 = scmp.eq.s32.totalorder %s22, 0
      %p98 = por %p96, %p97
      %s100 = sadd.s32 %s99, 1
      %p103 = scmp.eq.s32.totalorder %s16, 7
      %p104 = scmp.ne.s32.totalorder %s99, %s101
      %p105 = scmp.eq.s32.totalorder %s16, 0
      %p106 = por %p104, %p105
      %p107 = scmp.ne.s32.totalorder %s99, %s101
      %p108 = scmp.eq.s32.totalorder %s21, 7
      %p109 = por %p107, %p108
      %p110 = scmp.ne.s32.totalorder %s101, %s102
      %p111 = scmp.eq.s32.totalorder %s21, 0
      %p112 = por %p110, %p111
      %p113 = scmp.ne.s32.totalorder %s101, %s102
      %p114 = scmp.eq.s32.totalorder %s22, 7
      %p115 = por %p113, %p114
      %p117 = scmp.ne.s32.totalorder %s102, %s116
      %p118 = scmp.eq.s32.totalorder %s22, 0
      %p119 = por %p117, %p118
      %s120 = ssub.s32 %s23, %s42
      %s121 = ssub.s32 %s25, %s34
      %s122 = sor.u32 %s120, %s121
      %s123 = ssub.s32 %s24, %s38
      %s124 = sor.u32 %s122, %s123
      %p125 = scmp.eq.s32.totalorder %s124, 0
      %s127 = sadd.s32 %s126, 1
      %s128 = scalar_select %p125, %s126, %s127
      %p131 = pneg %p125
      %p132 = scmp.eq.s32.totalorder %s16, 7
      %p133 = por %p131, %p132
      %p134 = scmp.ne.s32.totalorder %s126, %s129
      %p135 = scmp.eq.s32.totalorder %s16, 0
      %p136 = por %p134, %p135
      %p137 = scmp.ne.s32.totalorder %s126, %s129
      %p138 = scmp.eq.s32.totalorder %s21, 7
      %p139 = por %p137, %p138
      %p140 = scmp.ne.s32.totalorder %s129, %s130
      %p141 = scmp.eq.s32.totalorder %s21, 0
      %p142 = por %p140, %p141
      %p143 = scmp.ne.s32.totalorder %s129, %s130
      %p144 = scmp.eq.s32.totalorder %s22, 7
      %p145 = por %p143, %p144
      %p147 = scmp.ne.s32.totalorder %s130, %s146
      %p148 = scmp.eq.s32.totalorder %s22, 0
      %p149 = por %p147, %p148
      %p150 = scmp.le.s32.totalorder 1, %s16
      %p151 = scmp.lt.s32.totalorder %s16, 9
      %p152 = pnand %p150, %p151
      %p153 = pneg %p152
      // Predicated region
      $region9: #{tpu_custom_call.1} parent=5 // pred_check
        _
      $region10: #{tpu_custom_call.1} parent=5 // pred_check_branch
        %155 = sbr.rel (%p152) target = $region12
      $region11: #{tpu_custom_call.1} parent=5 // pred_region
        %s156 = ssub.s32 %s16, 1
        // Predicated region
        $region13: #{tpu_custom_call.1} parent=11 // pred_check
          %p157 = pneg %p91
        $region14: #{tpu_custom_call.1} parent=11 // pred_check_branch
          %159 = sbr.rel (%p157) target = $region16
        $region15: #{tpu_custom_call.1} parent=11 // pred_region
          %p160 = scmp.lt.s32.totalorder %s27, 0
          %s161 = scalar_select %p160, %s27, 0
          %s162 = scalar_lea.vmem %s1, %s161
        $region16: #{tpu_custom_call.1} parent=11 // pred_fallthru
          _
        // Predicated region
        $region17: #{tpu_custom_call.1} parent=11 // pred_check
          %p163 = pneg %p112
        $region18: #{tpu_custom_call.1} parent=11 // pred_check_branch
          %165 = sbr.rel (%p163) target = $region20
        $region19: #{tpu_custom_call.1} parent=11 // pred_region
          _
        $region20: #{tpu_custom_call.1} parent=11 // pred_fallthru
          _
      $region12: #{tpu_custom_call.1} parent=5 // pred_fallthru
        _
      %p166 = scmp.lt.s32.totalorder %s16, 8
      // Predicated region
      $region21: #{tpu_custom_call.1} parent=5 // pred_check
        %p167 = pneg %p166
      $region22: #{tpu_custom_call.1} parent=5 // pred_check_branch
        %169 = sbr.rel (%p167) target = $region24
      $region23: #{tpu_custom_call.1} parent=5 // pred_region
        // Predicated region
        $region25: #{tpu_custom_call.1} parent=23 // pred_check
          %p170 = pneg %p59
        $region26: #{tpu_custom_call.1} parent=23 // pred_check_branch
          %172 = sbr.rel (%p170) target = $region28
        $region27: #{tpu_custom_call.1} parent=23 // pred_region
          %s173 = sand.u32 %s49, 1
          %s174 = scalar_lea.sflag [#allocation4], %s173
          %s175 = sand.u32 %s49, 1
          %s176 = smul.addr %s175, 16
          %s177 = scalar_lea.vmem [#allocation3], %s176
          %s178 = smul.u32 2, %s24
          %s180 = ssub.s32 256, 256
          %181 = vsyncadd %s174, %s180
          %s182 = sadd.s32 %s25, %s178
          %s183 = smul.addr %s23, 2
          %s184 = sadd.s32 %s182, %s183
          %s185 = smul.addr %s184, 128
          %s186 = scalar_lea.hbm %s0, %s185
          %s187 = sshll.u32 %s177, 4
          %s188 = int_to_ptr.vmem [resolvable:$true] %s187
          %193 = dma.hbm_to_vmem [thread:$0]  %s186, 256, %s188, %s174, 128, 128, 8
        $region28: #{tpu_custom_call.1} parent=23 // pred_fallthru
          _
      $region24: #{tpu_custom_call.1} parent=5 // pred_fallthru
        _
      %p194 = scmp.le.s32.totalorder 1, %s16
      %p195 = scmp.lt.s32.totalorder %s16, 9
      %p196 = pnand %p194, %p195
      %p197 = pneg %p196
      // Predicated region
      $region29: #{tpu_custom_call.1} parent=5 // pred_check
        _
      $region30: #{tpu_custom_call.1} parent=5 // pred_check_branch
        %199 = sbr.rel (%p196) target = $region32
      $region31: #{tpu_custom_call.1} parent=5 // pred_region
        %s200 = ssub.s32 %s16, 1
        %s201 = sand.u32 %s52, 1
        %s202 = scalar_lea.sflag [#allocation4], %s201
        %s203 = sand.u32 %s52, 1
        %s204 = smul.addr %s203, 16
        %s205 = scalar_lea.vmem [#allocation3], %s204
        // Predicated region
        $region33: #{tpu_custom_call.1} parent=31 // pred_check
          %p206 = pneg %p65
        $region34: #{tpu_custom_call.1} parent=31 // pred_check_branch
          %208 = sbr.rel (%p206) target = $region36
        $region35: #{tpu_custom_call.1} parent=31 // pred_region
          %209 = dma.done %s202, 256
        $region36: #{tpu_custom_call.1} parent=31 // pred_fallthru
          _
        %s210 = sand.u32 %s52, 1
        %s211 = scalar_lea.sflag [#allocation4], %s210
        %s212 = sand.u32 %s52, 1
        %s213 = smul.addr %s212, 16
        %s214 = scalar_lea.vmem [#allocation3], %s213
        %p215 = pneg %p65
        %p216 = pneg %p62
        %p217 = scmp.lt.s32.totalorder %s27, 0
        %s218 = scalar_select %p217, %s27, 0
        %s219 = scalar_lea.vmem %s1, %s218
        %p220 = pneg %p91
        %p221 = pneg %p88
        %p222 = pneg %p112
        %p223 = pneg %p109
        %p224 = pneg %p142
        %p225 = pneg %p139
        %s226 = sand.u32 %s129, 1
        %s227 = scalar_lea.sflag [#allocation5], %s226
        %s228 = sand.u32 %s129, 1
        %s229 = smul.addr %s228, 16
        %s230 = scalar_lea.vmem [#allocation6], %s229
        %s231 = smul.u32 2, %s27
        %p232 = scmp.lt.s32.totalorder %s27, 0
        %s233 = scalar_select %p232, %s27, 0
        %s234 = scalar_lea.vmem %s1, %s233
        %s235 = smul.u32 2, %s28
        %v236 = vld [vmem:[%s205] sm:$0xff]
        %v237 = vld [vmem:[%s205 + $0x8] sm:$0xff]
        %238 = vxpose.xlu0.b32.start [1/16] %v236, 128
        %239 = vxpose.xlu0.b32.cont [2/16] %v237, 128
        %240 = vxpose.xlu0.b32.cont [3/16] 0.0, 128
        %241 = vxpose.xlu0.b32.cont [4/16] 0.0, 128
        %242 = vxpose.xlu0.b32.cont [5/16] 0.0, 128
        %243 = vxpose.xlu0.b32.cont [6/16] 0.0, 128
        %244 = vxpose.xlu0.b32.cont [7/16] 0.0, 128
        %245 = vxpose.xlu0.b32.cont [8/16] 0.0, 128
        %246 = vxpose.xlu0.b32.cont [9/16] 0.0, 128
        %247 = vxpose.xlu0.b32.cont [10/16] 0.0, 128
        %248 = vxpose.xlu0.b32.cont [11/16] 0.0, 128
        %249 = vxpose.xlu0.b32.cont [12/16] 0.0, 128
        %250 = vxpose.xlu0.b32.cont [13/16] 0.0, 128
        %251 = vxpose.xlu0.b32.cont [14/16] 0.0, 128
        %252 = vxpose.xlu0.b32.cont [15/16] 0.0, 128
        %253 = vxpose.xlu0.b32.end [16/16] 0.0, 128
        %v254 = vpop.trf.xlu0
        %v255 = vpop.trf.xlu0
        %v256 = vpop.trf.xlu0
        %v257 = vpop.trf.xlu0
        %v258 = vpop.trf.xlu0
        %v259 = vpop.trf.xlu0
        %v260 = vpop.trf.xlu0
        %v261 = vpop.trf.xlu0
        %v262 = vpop.trf.xlu0
        %v263 = vpop.trf.xlu0
        %v264 = vpop.trf.xlu0
        %v265 = vpop.trf.xlu0
        %v266 = vpop.trf.xlu0
        %v267 = vpop.trf.xlu0
        %v268 = vpop.trf.xlu0
        %v269 = vpop.trf.xlu0
        %v270 = vld [vmem:[%s234] sm:$0x1]
        %v272 = vlaneseq
        %v273 = vshrl.u32 %v272, 7
        %v274 = vsub.s32 0, %v273
        %v275 = vrot.slane %v270, %v274
        %v277 = vmul.f32 %v254, %v275
        %v278 = vmul.f32 %v255, %v275
        %s279 = sld [smem:[#allocation2]]
        %v280 = vstv %s279
        %v281 = vadd.f32 %v277, %v280
        %v282 = vadd.f32 %v278, %v280
        %vm283 = vcmask 130048
        %284 = vst.msk [vmem:[%s230] sm:$0xff] %vm283, %v281
        %285 = vst.msk [vmem:[%s230 + $0x8] sm:$0xff] %vm283, %v282
        %s286 = sand.u32 %s129, 1
        %s287 = scalar_lea.sflag [#allocation5], %s286
        %s288 = sand.u32 %s129, 1
        %s289 = smul.addr %s288, 16
        %s290 = scalar_lea.vmem [#allocation6], %s289
        // Predicated region
        $region37: #{tpu_custom_call.1} parent=31 // pred_check
          %p291 = pneg %p139
        $region38: #{tpu_custom_call.1} parent=31 // pred_check_branch
          %293 = sbr.rel (%p291) target = $region40
        $region39: #{tpu_custom_call.1} parent=31 // pred_region
          %s294 = smul.u32 2, %s28
          %s296 = ssub.s32 256, 256
          %297 = vsyncadd %s287, %s296
          %s298 = sadd.s32 %s27, %s294
          %s299 = smul.addr %s26, 2
          %s300 = sadd.s32 %s298, %s299
          %s301 = smul.addr %s300, 128
          %s302 = scalar_lea.hbm %s3, %s301
          %s303 = sshll.u32 %s290, 4
          %s304 = int_to_ptr.vmem [resolvable:$true] %s303
          %309 = dma.vmem_to_hbm [thread:$0]  %s304, 256, %s302, %s287, 128, 128, 8
        $region40: #{tpu_custom_call.1} parent=31 // pred_fallthru
          _
      $region32: #{tpu_custom_call.1} parent=5 // pred_fallthru
        _
      %p310 = scmp.le.s32.totalorder 2, %s16
      // Predicated region
      $region41: #{tpu_custom_call.1} parent=5 // pred_check
        %p311 = pneg %p310
      $region42: #{tpu_custom_call.1} parent=5 // pred_check_branch
        %313 = sbr.rel (%p311) target = $region44
      $region43: #{tpu_custom_call.1} parent=5 // pred_region
        %s314 = ssub.s32 %s16, 2
        // Predicated region
        $region45: #{tpu_custom_call.1} parent=43 // pred_check
          %p315 = pneg %p145
        $region46: #{tpu_custom_call.1} parent=43 // pred_check_branch
          %317 = sbr.rel (%p315) target = $region48
        $region47: #{tpu_custom_call.1} parent=43 // pred_region
          %s318 = sand.u32 %s130, 1
          %s319 = scalar_lea.sflag [#allocation5], %s318
          %s320 = sand.u32 %s130, 1
          %s321 = smul.addr %s320, 16
          %s322 = scalar_lea.vmem [#allocation6], %s321
          %323 = dma.done %s319, 256
        $region48: #{tpu_custom_call.1} parent=43 // pred_fallthru
          _
      $region44: #{tpu_custom_call.1} parent=5 // pred_fallthru
        _
    $region6: #{tpu_custom_call.1} parent=1 // loop_footer
      %s20 = sadd.s32 1, %s16
    $region7: #{tpu_custom_call.1} parent=1 // loop_footer_branch
      %15 = sbr.rel target = $region3
    $region8: #{tpu_custom_call.1} parent=1 // loop_exit
      _
    %324 = vsyncpa [#allocation4], 1
    %s325 = scalar_lea.sflag [#allocation4], 1
    %326 = vsyncpa %s325, 1
    %327 = vsyncpa [#allocation5], 1
    %s328 = scalar_lea.sflag [#allocation5], 1
    %329 = vsyncpa %s328, 1

</llo_original>
